<compile_context>
chip_gen: v5e
topology: v5e:2x2
jax: 0.10.0
libtpu: 0.0.40
codegen_flags: <defaults>
</compile_context>

<pallas_src>
import functools
import math

import numpy as np
import jax
import jax.numpy as jnp
from jax import lax
from jax.experimental import pallas as pl
from jax.experimental.pallas import tpu as pltpu


# ----------------------------- Pallas kernels --------------------------------

def _cos_scores_kernel(t_ref, v_ref, m_ref, o_ref, *, temp):
    """cos-sim(text, vision) -> mask -> max over text -> softmax(./temp) over vision.

    Output is a lane-dense [1, Lv] row (instead of a [Lv, 1] column).
    """
    t = t_ref[...]                                    # [Lt, D] f32
    v = v_ref[...]                                    # [Lv, D] f32
    m = m_ref[...]                                    # [Lt, 1]  (1.0 = keep, 0.0 = masked)

    dots = lax.dot_general(t, v, (((1,), (1,)), ((), ())),
                           preferred_element_type=jnp.float32)          # [Lt, Lv]
    tnorm = jnp.sqrt(jnp.sum(t * t, axis=-1, keepdims=True))            # [Lt, 1]
    ones = jnp.ones((1, t.shape[-1]), jnp.float32)
    vsq = lax.dot_general(ones, v * v, (((1,), (1,)), ((), ())),
                          preferred_element_type=jnp.float32)           # [1, Lv]
    vnorm = jnp.sqrt(vsq)                                               # [1, Lv]

    denom = jnp.maximum(tnorm * vnorm, 1e-8)
    cos = dots * pl.reciprocal(denom, approx=True)
    cos = jnp.where(m > 0.5, cos, 0.0)                # masked_fill(mask == False, 0.0)

    row = jnp.max(cos, axis=0, keepdims=True) * (1.0 / temp)            # [1, Lv]
    mx = jnp.max(row, axis=-1, keepdims=True)
    e = jnp.exp(row - mx)
    o_ref[...] = e * pl.reciprocal(jnp.sum(e, axis=-1, keepdims=True), approx=True)


def _mha_ln(xq, xkv, wq, bq, wkv, bkv, wo, bo, gamma, beta, num_heads, eps):
    """Q/KV proj -> per-head softmax(QK^T/sqrt(dh)) V -> out-proj -> +residual -> LayerNorm.

    Per-head slices are realized as lane masks on K/V so head outputs accumulate
    directly into their lanes (no lane slicing / concatenate of 16-wide chunks).
    """
    E = xq.shape[-1]
    dh = E // num_heads
    scale = 1.0 / math.sqrt(dh)

    q = jnp.dot(xq.astype(jnp.bfloat16), wq,
                preferred_element_type=jnp.float32) + bq                # [Lq, E]
    kv = jnp.dot(xkv.astype(jnp.bfloat16), wkv,
                 preferred_element_type=jnp.float32) + bkv              # [Lk, 2E]
    k = kv[:, :E]
    v = kv[:, E:]

    q_b = q.astype(jnp.bfloat16)
    lane = lax.broadcasted_iota(jnp.int32, (1, E), 1)                   # [1, E]

    attn = jnp.zeros(q.shape, jnp.float32)                              # [Lq, E]
    for h in range(num_heads):                        # unrolled at trace time
        hm = jnp.where((lane >= h * dh) & (lane < (h + 1) * dh), 1.0, 0.0)
        kh = (k * hm).astype(jnp.bfloat16)            # zeros outside head h lanes
        vh = (v * hm).astype(jnp.bfloat16)
        s = lax.dot_general(q_b, kh, (((1,), (1,)), ((), ())),
                            preferred_element_type=jnp.float32) * scale  # [Lq, Lk]
        mx = jnp.max(s, axis=-1, keepdims=True)
        p = jnp.exp(s - mx)
        p = p * pl.reciprocal(jnp.sum(p, axis=-1, keepdims=True), approx=True)
        attn = attn + jnp.dot(p.astype(jnp.bfloat16), vh,
                              preferred_element_type=jnp.float32)        # acc into lanes

    out = jnp.dot(attn.astype(jnp.bfloat16), wo,
                  preferred_element_type=jnp.float32) + bo               # [Lq, E]

    r = out + xq                                      # residual add
    mu = jnp.mean(r, axis=-1, keepdims=True)
    d = r - mu
    var = jnp.mean(d * d, axis=-1, keepdims=True)
    return d * lax.rsqrt(var + eps) * gamma + beta


def _expander_kernel(concat_ref, rem_ref,
                     wq1_ref, bq1_ref, wkv1_ref, bkv1_ref, wo1_ref, bo1_ref, g1_ref, be1_ref,
                     wq2_ref, bq2_ref, wkv2_ref, bkv2_ref, wo2_ref, bo2_ref, g3_ref, be3_ref,
                     wq3_ref, bq3_ref, wkv3_ref, bkv3_ref, wo3_ref, bo3_ref, g2_ref, be2_ref,
                     fw1_ref, fb1_ref, fw2_ref, fb2_ref, g4_ref, be4_ref, sw_ref, sb_ref,
                     o_ref, *, num_heads, eps):
    """Entire ExpanderModule forward fused in VMEM; emits the sigmoid scores as [1, Lr]."""
    concat = concat_ref[...]                          # [Lc, E] f32
    rem = rem_ref[...]                                # [Lr, E] f32

    # self_attn(concat, concat, concat) -> +concat -> norm1
    x = _mha_ln(concat, concat,
                wq1_ref[...], bq1_ref[...], wkv1_ref[...], bkv1_ref[...],
                wo1_ref[...], bo1_ref[...], g1_ref[...], be1_ref[...], num_heads, eps)

    # self_attn_2(rem, rem, rem) -> +rem -> norm3
    rem_n = _mha_ln(rem, rem,
                    wq2_ref[...], bq2_ref[...], wkv2_ref[...], bkv2_ref[...],
                    wo2_ref[...], bo2_ref[...], g3_ref[...], be3_ref[...], num_heads, eps)

    # cross_attn(rem_n, x, x) -> +rem_n -> norm2
    x2 = _mha_ln(rem_n, x,
                 wq3_ref[...], bq3_ref[...], wkv3_ref[...], bkv3_ref[...],
                 wo3_ref[...], bo3_ref[...], g2_ref[...], be2_ref[...], num_heads, eps)

    # FFN: w1 + GELU(exact) + w2 -> +residual -> norm4
    h = jnp.dot(x2.astype(jnp.bfloat16), fw1_ref[...],
                preferred_element_type=jnp.float32) + fb1_ref[...]       # [Lr, H]
    h = 0.5 * h * (1.0 + lax.erf(h * (1.0 / math.sqrt(2.0))))
    xf = jnp.dot(h.astype(jnp.bfloat16), fw2_ref[...],
                 preferred_element_type=jnp.float32) + fb2_ref[...]      # [Lr, E]
    r = x2 + xf
    mu = jnp.mean(r, axis=-1, keepdims=True)
    d = r - mu
    var = jnp.mean(d * d, axis=-1, keepdims=True)
    y = d * lax.rsqrt(var + eps) * g4_ref[...] + be4_ref[...]            # [Lr, E]

    # score = sigmoid(y @ w^T + b) computed as w [1,E] x y^T -> [1, Lr] (lane-dense store)
    s = lax.dot_general(sw_ref[...], y, (((1,), (1,)), ((), ())),
                        preferred_element_type=jnp.float32) + sb_ref[...]
    o_ref[...] = 1.0 / (1.0 + jnp.exp(-s))


# ----------------------------- Pallas wrappers --------------------------------

def _full(shape):
    zeros = (0,) * len(shape)
    return pl.BlockSpec(tuple(shape), lambda i: zeros)


def cos_sim_softmax_scores(vision, text, attention_mask, temp):
    Lv, D = vision.shape
    Lt = text.shape[0]
    maskf = attention_mask.astype(jnp.float32).reshape(Lt, 1)
    out = pl.pallas_call(
        functools.partial(_cos_scores_kernel, temp=float(temp)),
        out_shape=jax.ShapeDtypeStruct((1, Lv), jnp.float32),
        grid=(1,),
        in_specs=[_full((Lt, D)), _full((Lv, D)), _full((Lt, 1))],
        out_specs=_full((1, Lv)),
        compiler_params=pltpu.CompilerParams(dimension_semantics=("arbitrary",)),
    )(text, vision, maskf)
    return out[0]


def expander_forward(params, selected_patches, remained_patches, text_embed,
                     num_heads, eps=1e-5):
    """ExpanderModule forward as ONE fused pallas_call."""
    # TODO(synk): nn.MultiheadAttention dropout (p=0.1) is omitted (eval-mode semantics).
    concat = jnp.concatenate([selected_patches, text_embed], axis=0)
    Lc, E = concat.shape
    Lr = remained_patches.shape[0]
    H = params["ffn_w1"].shape[1]

    def mha_args(p):
        return (p["wq"], p["bq"].reshape(1, E),
                p["wkv"], p["bkv"].reshape(1, 2 * E),
                p["wo"], p["bo"].reshape(1, E))

    def mha_specs():
        return [_full((E, E)), _full((1, E)),
                _full((E, 2 * E)), _full((1, 2 * E)),
                _full((E, E)), _full((1, E))]

    def ln_args(ln):
        g, b = ln
        return (g.reshape(1, E), b.reshape(1, E))

    ln_specs = [_full((1, E)), _full((1, E))]

    in_specs = ([_full((Lc, E)), _full((Lr, E))]
                + mha_specs() + ln_specs      # self_attn  + norm1
                + mha_specs() + ln_specs      # self_attn_2 + norm3
                + mha_specs() + ln_specs      # cross_attn + norm2
                + [_full((E, H)), _full((1, H)), _full((H, E)), _full((1, E))]
                + ln_specs                    # norm4
                + [_full((1, E)), _full((1, 1))])   # score head

    args = ((concat, remained_patches)
            + mha_args(params["self_attn"]) + ln_args(params["norm1"])
            + mha_args(params["self_attn_2"]) + ln_args(params["norm3"])
            + mha_args(params["cross_attn"]) + ln_args(params["norm2"])
            + (params["ffn_w1"], params["ffn_b1"].reshape(1, H),
               params["ffn_w2"], params["ffn_b2"].reshape(1, E))
            + ln_args(params["norm4"])
            + (params["score_w"], params["score_b"].reshape(1, 1)))

    out = pl.pallas_call(
        functools.partial(_expander_kernel, num_heads=num_heads, eps=float(eps)),
        out_shape=jax.ShapeDtypeStruct((1, Lr), jnp.float32),
        grid=(1,),
        in_specs=in_specs,
        out_specs=_full((1, Lr)),
        compiler_params=pltpu.CompilerParams(dimension_semantics=("arbitrary",)),
    )(*args)
    return out[0]


# ----------------------------- Router (host glue) -----------------------------

def get_neighbor_indices_np(indices, grid_size, padding_size):
    if indices.size == 0:
        return np.zeros((0, 0), dtype=np.int64)
    rows = indices // grid_size
    cols = indices % grid_size
    offs = np.array([(i, j)
                     for i in range(-padding_size, padding_size + 1)
                     for j in range(-padding_size, padding_size + 1)
                     if not (i == 0 and j == 0)], dtype=np.int64)
    coords = np.stack([rows, cols], axis=1)                     # [S, 2]
    padded = coords[:, None, :] + offs[None, :, :]              # [S, 8, 2]
    padded = np.clip(padded, 0, grid_size - 1)
    return padded[:, :, 0] * grid_size + padded[:, :, 1]


def get_temperature(cfg, step):
    if step < cfg["temperature_anneal_steps"]:
        return cfg["initial_temperature"] - (
            cfg["initial_temperature"] - cfg["final_temperature"]
        ) * (step / cfg["temperature_anneal_steps"])
    return cfg["final_temperature"]


def router_forward(params, cfg, vision_feature, text_embed, attention_mask,
                   inference_mode=False, step=0, seed=0):
    Lv, D = vision_feature.shape

    # --- hot path 1: cosine-sim + mask + max + softmax(./temp)  (Pallas) ---
    scores = cos_sim_softmax_scores(vision_feature, text_embed, attention_mask, cfg["temp"])
    scores_np = np.asarray(jax.device_get(scores), dtype=np.float64)

    # noise_std == 0.0 in the reference config, so the additive noise is a no-op.
    order = np.argsort(-scores_np, kind="stable")
    cum = np.cumsum(scores_np[order])
    threshold_index = int(np.sum(cum <= cfg["initial_gamma"]))
    selected_indices = order[:threshold_index]

    # Neighbor expansion on the token grid (the reference hardcodes grid_size=24 here).
    neigh = get_neighbor_indices_np(selected_indices, cfg["grid_size"], cfg["padding_size"])
    unique_indices = (np.unique(neigh.reshape(-1)) if neigh.size
                      else np.zeros((0,), dtype=np.int64))
    selected_vf = jnp.take(vision_feature, jnp.asarray(unique_indices, jnp.int32), axis=0)

    remained_indices = np.setdiff1d(np.arange(Lv, dtype=np.int64), unique_indices)
    R = int(remained_indices.size)

    if R == 0:
        # TODO(synk): degenerate case (all tokens selected); torch MHA would fail on empty seq.
        final_indices = unique_indices
    else:
        remained_vf = jnp.take(vision_feature, jnp.asarray(remained_indices, jnp.int32), axis=0)

        # --- hot path 2: ExpanderModule, fully fused into a single Pallas launch ---
        global_expand_scores = expander_forward(
            params, selected_vf, remained_vf, text_embed, cfg["num_heads"])

        if inference_mode:
            k = int(threshold_index * cfg["expand_ratio"])
            k = min(k, R)
            chosen = np.argsort(-np.asarray(global_expand_scores))[:k]
        else:
            tau = get_temperature(cfg, step)
            gkey = jax.random.PRNGKey(seed)
            gumbels = -jnp.log(jax.random.exponential(gkey, global_expand_scores.shape))
            y_soft = jax.nn.softmax((global_expand_scores + gumbels) / tau)
            num_expand = int(len(unique_indices) * cfg["expand_ratio"])
            num_expand = min(num_expand, R)  # TODO(synk): torch.multinomial errors if num_expand > R
            probs = np.asarray(y_soft, dtype=np.float64)
            probs = probs / probs.sum()
            rng = np.random.default_rng(seed)
            chosen = (rng.choice(R, size=num_expand, replace=False, p=probs)
                      if num_expand > 0 else np.zeros((0,), dtype=np.int64))

        global_expand_indices = remained_indices[np.asarray(chosen, dtype=np.int64)]
        final_indices = np.unique(np.concatenate([unique_indices, global_expand_indices]))

    final_vf = jnp.take(vision_feature, jnp.asarray(final_indices, jnp.int32), axis=0)
    return final_vf, final_indices


# ----------------------------- parameter init ---------------------------------

def init_params(key, embed_dim, hidden_dim):
    def w(k, shape, scale=0.02, dtype=jnp.bfloat16):
        return (scale * jax.random.normal(k, shape, jnp.float32)).astype(dtype)

    def mha_params(k):
        ks = jax.random.split(k, 3)
        E = embed_dim
        return dict(
            wq=w(ks[0], (E, E)), bq=jnp.zeros((E,), jnp.float32),
            wkv=w(ks[1], (E, 2 * E)), bkv=jnp.zeros((2 * E,), jnp.float32),
            wo=w(ks[2], (E, E)), bo=jnp.zeros((E,), jnp.float32),
        )

    ks = jax.random.split(key, 8)
    E, H = embed_dim, hidden_dim
    ln = lambda: (jnp.ones((E,), jnp.float32), jnp.zeros((E,), jnp.float32))
    return dict(
        self_attn=mha_params(ks[0]),
        self_attn_2=mha_params(ks[1]),
        cross_attn=mha_params(ks[2]),
        norm1=ln(), norm2=ln(), norm3=ln(), norm4=ln(),
        ffn_w1=w(ks[3], (E, H)), ffn_b1=jnp.zeros((H,), jnp.float32),
        ffn_w2=w(ks[4], (H, E)), ffn_b2=jnp.zeros((E,), jnp.float32),
        score_w=w(ks[5], (1, E), dtype=jnp.float32), score_b=jnp.zeros((1,), jnp.float32),
    )


# ----------------------------------- main --------------------------------------

if __name__ == "__main__":
    embed_dim = 64
    hidden_dim = 128
    num_heads = 4
    grid_size = 12               # L_v = grid_size^2 (reference uses 24 -> 576 tokens)
    Lv = grid_size * grid_size
    Lt = 8

    key = jax.random.PRNGKey(0)
    kv, kt, kp = jax.random.split(key, 3)
    vision_feature = jax.random.normal(kv, (Lv, embed_dim), jnp.float32)
    text_embed = jax.random.normal(kt, (Lt, embed_dim), jnp.float32)
    attention_mask = jnp.array([True] * 6 + [False] * 2)

    params = init_params(kp, embed_dim, hidden_dim)
    cfg = dict(
        initial_gamma=0.2,      # scaled for the small synthetic example (reference: 0.065)
        expand_ratio=0.3,
        temp=0.1,               # scaled for the small synthetic example (reference: 0.05)
        initial_temperature=1.0,
        final_temperature=0.1,
        temperature_anneal_steps=30000,
        grid_size=grid_size,
        padding_size=1,
        num_heads=num_heads,
    )

    final_vf, final_idx = router_forward(
        params, cfg, vision_feature, text_embed, attention_mask,
        inference_mode=False, step=0, seed=0)
    jax.block_until_ready(final_vf)
    print("KERNEL_OK")
</pallas_src>

<mosaic_0001>
module attributes {stable_mosaic.version = 11 : i64} {
  func.func @_cos_scores_kernel(%arg0: i32, %arg1: memref<8x64xf32, #tpu.memory_space<vmem>>, %arg2: memref<144x64xf32, #tpu.memory_space<vmem>>, %arg3: memref<8x1xf32, #tpu.memory_space<vmem>>, %arg4: memref<1x144xf32, #tpu.memory_space<vmem>>) attributes {dimension_semantics = [#tpu.dimension_semantics<arbitrary>], iteration_bounds = array<i64: 1>, scalar_prefetch = 0 : i64, scratch_operands = 0 : i64, tpu.core_type = #tpu.core_type<tc>, window_params = [{pipeline_mode = #tpu.pipeline_mode<synchronous>, transform_indices = @transform_0, window_bounds = array<i64: 8, 64>}, {pipeline_mode = #tpu.pipeline_mode<synchronous>, transform_indices = @transform_1, window_bounds = array<i64: 144, 64>}, {pipeline_mode = #tpu.pipeline_mode<synchronous>, transform_indices = @transform_2, window_bounds = array<i64: 8, 1>}, {pipeline_mode = #tpu.pipeline_mode<synchronous>, transform_indices = @transform_3, window_bounds = array<i64: 1, 144>}]} {
    %c0 = arith.constant 0 : index
    %c0_0 = arith.constant 0 : index
    %0 = vector.load %arg1[%c0, %c0_0] : memref<8x64xf32, #tpu.memory_space<vmem>>, vector<8x64xf32>
    %c0_1 = arith.constant 0 : index
    %c0_2 = arith.constant 0 : index
    %1 = vector.load %arg2[%c0_1, %c0_2] : memref<144x64xf32, #tpu.memory_space<vmem>>, vector<144x64xf32>
    %c0_3 = arith.constant 0 : index
    %c0_4 = arith.constant 0 : index
    %2 = vector.load %arg3[%c0_3, %c0_4] : memref<8x1xf32, #tpu.memory_space<vmem>>, vector<8x1xf32>
    %cst = arith.constant dense<0.000000e+00> : vector<8x144xf32>
    %3 = tpu.matmul %0, %1, %cst {dimension_numbers = #tpu.dot_dimension_numbers<[1], [1], [0], [0], [0, 0, 1, 0], [], []>} : vector<8x64xf32>, vector<144x64xf32>, vector<8x144xf32> -> vector<8x144xf32>
    %4 = arith.mulf %0, %0 : vector<8x64xf32>
    %cst_5 = arith.constant dense<0.000000e+00> : vector<8xf32>
    %5 = vector.multi_reduction <add>, %4, %cst_5 [1] : vector<8x64xf32> to vector<8xf32>
    %6 = vector.shape_cast %5 : vector<8xf32> to vector<8x1xf32>
    %7 = math.sqrt %6 : vector<8x1xf32>
    %cst_6 = arith.constant 1.000000e+00 : f32
    %8 = vector.broadcast %cst_6 : f32 to vector<1x64xf32>
    %9 = arith.mulf %1, %1 : vector<144x64xf32>
    %cst_7 = arith.constant dense<0.000000e+00> : vector<1x144xf32>
    %10 = tpu.matmul %8, %9, %cst_7 {dimension_numbers = #tpu.dot_dimension_numbers<[1], [1], [0], [0], [0, 0, 1, 0], [], []>} : vector<1x64xf32>, vector<144x64xf32>, vector<1x144xf32> -> vector<1x144xf32>
    %11 = math.sqrt %10 : vector<1x144xf32>
    %12 = vector.broadcast %7 : vector<8x1xf32> to vector<8x144xf32>
    %13 = vector.broadcast %11 : vector<1x144xf32> to vector<8x144xf32>
    %14 = arith.mulf %12, %13 : vector<8x144xf32>
    %cst_8 = arith.constant 9.99999993E-9 : f32
    %15 = vector.broadcast %cst_8 : f32 to vector<8x144xf32>
    %16 = arith.maximumf %14, %15 : vector<8x144xf32>
    %17 = tpu.reciprocal %16 {approx = true} : vector<8x144xf32> -> vector<8x144xf32>
    %18 = arith.mulf %3, %17 : vector<8x144xf32>
    %cst_9 = arith.constant 5.000000e-01 : f32
    %19 = vector.broadcast %cst_9 : f32 to vector<8x1xf32>
    %20 = arith.cmpf ogt, %2, %19 : vector<8x1xf32>
    %cst_10 = arith.constant 0.000000e+00 : f32
    %21 = vector.shape_cast %20 : vector<8x1xi1> to vector<8x1xi1>
    %22 = vector.broadcast %21 : vector<8x1xi1> to vector<8x144xi1>
    %23 = vector.broadcast %cst_10 : f32 to vector<8x144xf32>
    %24 = arith.select %22, %18, %23 : vector<8x144xi1>, vector<8x144xf32>
    %cst_11 = arith.constant dense<0xFF800000> : vector<144xf32>
    %25 = vector.multi_reduction <maximumf>, %24, %cst_11 [0] : vector<8x144xf32> to vector<144xf32>
    %26 = vector.shape_cast %25 : vector<144xf32> to vector<1x144xf32>
    %cst_12 = arith.constant 1.000000e+01 : f32
    %27 = vector.broadcast %cst_12 : f32 to vector<1x144xf32>
    %28 = arith.mulf %26, %27 : vector<1x144xf32>
    %cst_13 = arith.constant dense<0xFF800000> : vector<1xf32>
    %29 = vector.multi_reduction <maximumf>, %28, %cst_13 [1] : vector<1x144xf32> to vector<1xf32>
    %30 = vector.shape_cast %29 : vector<1xf32> to vector<1x1xf32>
    %31 = vector.broadcast %30 : vector<1x1xf32> to vector<1x144xf32>
    %32 = arith.subf %28, %31 : vector<1x144xf32>
    %33 = math.exp %32 : vector<1x144xf32>
    %cst_14 = arith.constant dense<0.000000e+00> : vector<1xf32>
    %34 = vector.multi_reduction <add>, %33, %cst_14 [1] : vector<1x144xf32> to vector<1xf32>
    %35 = vector.shape_cast %34 : vector<1xf32> to vector<1x1xf32>
    %36 = tpu.reciprocal %35 {approx = true} : vector<1x1xf32> -> vector<1x1xf32>
    %37 = vector.broadcast %36 : vector<1x1xf32> to vector<1x144xf32>
    %38 = arith.mulf %33, %37 : vector<1x144xf32>
    %c0_15 = arith.constant 0 : index
    %c0_16 = arith.constant 0 : index
    %39 = vector.load %arg4[%c0_15, %c0_16] : memref<1x144xf32, #tpu.memory_space<vmem>>, vector<1x144xf32>
    tpu.vector_store %arg4[%c0_15, %c0_16], %38 {strides = array<i32>} : memref<1x144xf32, #tpu.memory_space<vmem>>, vector<1x144xf32>,
    return
  }
  func.func @transform_0(%arg0: i32) -> (i32, i32) {
    %c0_i32 = arith.constant 0 : i32
    %c0_i32_0 = arith.constant 0 : i32
    %c0_i32_1 = arith.constant 0 : i32
    return %c0_i32, %c0_i32_0 : i32, i32
  }
  func.func @transform_1(%arg0: i32) -> (i32, i32) {
    %c0_i32 = arith.constant 0 : i32
    %c0_i32_0 = arith.constant 0 : i32
    %c0_i32_1 = arith.constant 0 : i32
    return %c0_i32, %c0_i32_0 : i32, i32
  }
  func.func @transform_2(%arg0: i32) -> (i32, i32) {
    %c0_i32 = arith.constant 0 : i32
    %c0_i32_0 = arith.constant 0 : i32
    %c0_i32_1 = arith.constant 0 : i32
    return %c0_i32, %c0_i32_0 : i32, i32
  }
  func.func @transform_3(%arg0: i32) -> (i32, i32) {
    %c0_i32 = arith.constant 0 : i32
    %c0_i32_0 = arith.constant 0 : i32
    %c0_i32_1 = arith.constant 0 : i32
    return %c0_i32, %c0_i32_0 : i32, i32
  }
}

</mosaic_0001>

<llo_original>
// kernel: tpu_custom_call.1
$region0: #{tpu_custom_call.1}
  #allocation0 [shape = 'u32[]', space=smem, size = 0x4, offset = 0x4, fixed_abs, tag = 'smem constant byte address 0x4 - core index']
  #allocation1 [shape = 'u32[72,128]{1,0:T(1,128)}', space=vmem, size = 0x9000, scoped, tag = 'internal scratch']
  %s0 = inlined_call_operand.vmem [shape: f32[8,64], index: 0, kind: input, shape index: {}]
  %s1 = inlined_call_operand.vmem [shape: f32[144,64], index: 1, kind: input, shape index: {}]
  %s2 = inlined_call_operand.vmem [shape: f32[8,1], index: 2, kind: input, shape index: {}]
  %s3 = inlined_call_operand.hbm [shape: f32[1,144], index: 3, kind: output, shape index: {}]
  %s4 = sld [smem:[#allocation0]]
  $region22: #{tpu_custom_call.1} parent=0
    _
  %s6 = ssub.s32 1, %s4
  %s7 = scalar_select 0, %s6, %s4
  $region1: #{tpu_custom_call.1} parent=0
    #allocation2 [shape = 'u8[1024]{0}', space=vmem, size = 0x400, scoped, tag = 'output window, operand 0, single buffered']
    #allocation3 [shape = 's32[1]{0}', space=sflag, size = 0x4, scoped, tag = 'scoped memory for tpu_custom_call.1']
    %8 = vsyncpa [#allocation3], 0
    // Predicated region
    $region2: #{tpu_custom_call.1} parent=1 // pred_check
      _
    $region3: #{tpu_custom_call.1} parent=1 // pred_check_branch
      %10 = sbr.rel (0) target = $region5
    $region4: #{tpu_custom_call.1} parent=1 // pred_region
      _
    $region5: #{tpu_custom_call.1} parent=1 // pred_fallthru
      _
    // Predicated region
    $region6: #{tpu_custom_call.1} parent=1 // pred_check
      _
    $region7: #{tpu_custom_call.1} parent=1 // pred_check_branch
      %12 = sbr.rel (0) target = $region9
    $region8: #{tpu_custom_call.1} parent=1 // pred_region
      _
    $region9: #{tpu_custom_call.1} parent=1 // pred_fallthru
      _
    // Predicated region
    $region10: #{tpu_custom_call.1} parent=1 // pred_check
      _
    $region11: #{tpu_custom_call.1} parent=1 // pred_check_branch
      %14 = sbr.rel (0) target = $region13
    $region12: #{tpu_custom_call.1} parent=1 // pred_region
      _
    $region13: #{tpu_custom_call.1} parent=1 // pred_fallthru
      _
    %v15 = vld [vmem:[%s0] sm:$0xff]
    %v16 = vld [vmem:[%s1] sm:$0xff]
    %v17 = vld [vmem:[%s1 + $0x8] sm:$0xff]
    %v18 = vld [vmem:[%s1 + $0x10] sm:$0xff]
    %v19 = vld [vmem:[%s1 + $0x18] sm:$0xff]
    %v20 = vld [vmem:[%s1 + $0x20] sm:$0xff]
    %v21 = vld [vmem:[%s1 + $0x28] sm:$0xff]
    %v22 = vld [vmem:[%s1 + $0x30] sm:$0xff]
    %v23 = vld [vmem:[%s1 + $0x38] sm:$0xff]
    %v24 = vld [vmem:[%s1 + $0x40] sm:$0xff]
    %v25 = vld [vmem:[%s1 + $0x48] sm:$0xff]
    %v26 = vld [vmem:[%s1 + $0x50] sm:$0xff]
    %v27 = vld [vmem:[%s1 + $0x58] sm:$0xff]
    %v28 = vld [vmem:[%s1 + $0x60] sm:$0xff]
    %v29 = vld [vmem:[%s1 + $0x68] sm:$0xff]
    %v30 = vld [vmem:[%s1 + $0x70] sm:$0xff]
    %v31 = vld [vmem:[%s1 + $0x78] sm:$0xff]
    %v32 = vld [vmem:[%s1 + $0x80] sm:$0xff]
    %v33 = vld [vmem:[%s1 + $0x88] sm:$0xff]
    %v34 = vld [vmem:[%s2] sm:$0xff]
    %vm35 = vcmask 523264
    %v37 = vsel %vm35, %v15, 0
    %v40 = vsel %vm35, %v16, 0
    %v43 = vsel %vm35, %v17, 0
    %v46 = vsel %vm35, %v18, 0
    %v49 = vsel %vm35, %v19, 0
    %v52 = vsel %vm35, %v20, 0
    %v55 = vsel %vm35, %v21, 0
    %v58 = vsel %vm35, %v22, 0
    %v61 = vsel %vm35, %v23, 0
    %v64 = vsel %vm35, %v24, 0
    %v67 = vsel %vm35, %v25, 0
    %v70 = vsel %vm35, %v26, 0
    %v73 = vsel %vm35, %v27, 0
    %v76 = vsel %vm35, %v28, 0
    %v79 = vsel %vm35, %v29, 0
    %v82 = vsel %vm35, %v30, 0
    %v85 = vsel %vm35, %v31, 0
    %v88 = vsel %vm35, %v32, 0
    %v91 = vsel %vm35, %v33, 0
    %93 = vmatpush.xpose.msra.mxu0 %v85
    %94 = vmatpush.xpose.msra.mxu0 %v82
    %95 = vmatpush.xpose.msra.mxu0 %v79
    %96 = vmatpush.xpose.msra.mxu0 %v76
    %97 = vmatpush.xpose.msra.mxu0 %v73
    %98 = vmatpush.xpose.msra.mxu0 %v70
    %99 = vmatpush.xpose.msra.mxu0 %v67
    %100 = vmatpush.xpose.msra.mxu0 %v64
    %101 = vmatpush.xpose.msra.mxu0 %v61
    %102 = vmatpush.xpose.msra.mxu0 %v58
    %103 = vmatpush.xpose.msra.mxu0 %v55
    %104 = vmatpush.xpose.msra.mxu0 %v52
    %105 = vmatpush.xpose.msra.mxu0 %v49
    %106 = vmatpush.xpose.msra.mxu0 %v46
    %107 = vmatpush.xpose.msra.mxu0 %v43
    %108 = vmatpush.xpose.msra.mxu0 %v40
    %109 = vmatmul.f32.gmra.mxu0 %v37
    %v110 = vpop.f32.mrf.mxu0
    %v111 = vadd.f32 0.0, %v110
    %112 = vdwg.mxu0
    %113 = vmatpush.xpose.msra.mxu0 0.0
    %114 = vmatpush.xpose.msra.mxu0 0.0
    %115 = vmatpush.xpose.msra.mxu0 0.0
    %116 = vmatpush.xpose.msra.mxu0 0.0
    %117 = vmatpush.xpose.msra.mxu0 0.0
    %118 = vmatpush.xpose.msra.mxu0 0.0
    %119 = vmatpush.xpose.msra.mxu0 0.0
    %120 = vmatpush.xpose.msra.mxu0 0.0
    %121 = vmatpush.xpose.msra.mxu0 0.0
    %122 = vmatpush.xpose.msra.mxu0 0.0
    %123 = vmatpush.xpose.msra.mxu0 0.0
    %124 = vmatpush.xpose.msra.mxu0 0.0
    %125 = vmatpush.xpose.msra.mxu0 0.0
    %126 = vmatpush.xpose.msra.mxu0 0.0
    %127 = vmatpush.xpose.msra.mxu0 %v91
    %128 = vmatpush.xpose.msra.mxu0 %v88
    %129 = vmatmul.f32.gmra.mxu0 %v37
    %v130 = vpop.f32.mrf.mxu0
    %v131 = vadd.f32 0.0, %v130
    %132 = vdwg.mxu0
    %v133 = vmul.f32 %v15, %v15
    %v134 = vsel %vm35, %v133, 0.0
    %135 = vadd.xlane.f32.xlu0 %v134
    %v136 = vpop.xlane.xlu0 %135
    %v137 = vrsqrt.pop %v136
    %v138 = vmul.f32 %v137, %v136
    %v139 = vmul.f32 %v138, %v137
    %v140 = vmul.f32 0.5, %v139
    %v141 = vsub.f32 1.5, %v140
    %v142 = vmul.f32 %v137, %v141
    %v143 = vmul.f32 %v136, %v142
    %vm144 = vcmp.eq.f32.partialorder %v136, inf
    %v145 = vsel %vm144, %v136, %v143
    %vm146 = vcmp.eq.f32.partialorder %v136, 0.0
    %v147 = vand.u32 %v136, 2147483648
    %v148 = vsel %vm146, %v147, %v145
    %v149 = vmul.f32 %v16, %v16
    %v150 = vmul.f32 %v17, %v17
    %v151 = vmul.f32 %v18, %v18
    %v152 = vmul.f32 %v19, %v19
    %v153 = vmul.f32 %v20, %v20
    %v154 = vmul.f32 %v21, %v21
    %v155 = vmul.f32 %v22, %v22
    %v156 = vmul.f32 %v23, %v23
    %v157 = vmul.f32 %v24, %v24
    %v158 = vmul.f32 %v25, %v25
    %v159 = vmul.f32 %v26, %v26
    %v160 = vmul.f32 %v27, %v27
    %v161 = vmul.f32 %v28, %v28
    %v162 = vmul.f32 %v29, %v29
    %v163 = vmul.f32 %v30, %v30
    %v164 = vmul.f32 %v31, %v31
    %v165 = vmul.f32 %v32, %v32
    %v166 = vmul.f32 %v33, %v33
    %v168 = vsel %vm35, 1.0, 0
    %v171 = vsel %vm35, %v149, 0
    %v174 = vsel %vm35, %v150, 0
    %v177 = vsel %vm35, %v151, 0
    %v180 = vsel %vm35, %v152, 0
    %v183 = vsel %vm35, %v153, 0
    %v186 = vsel %vm35, %v154, 0
    %v189 = vsel %vm35, %v155, 0
    %v192 = vsel %vm35, %v156, 0
    %v195 = vsel %vm35, %v157, 0
    %v198 = vsel %vm35, %v158, 0
    %v201 = vsel %vm35, %v159, 0
    %v204 = vsel %vm35, %v160, 0
    %v207 = vsel %vm35, %v161, 0
    %v210 = vsel %vm35, %v162, 0
    %v213 = vsel %vm35, %v163, 0
    %v216 = vsel %vm35, %v164, 0
    %v219 = vsel %vm35, %v165, 0
    %v222 = vsel %vm35, %v166, 0
    %224 = vmatpush.xpose.msra.mxu0 %v216
    %225 = vmatpush.xpose.msra.mxu0 %v213
    %226 = vmatpush.xpose.msra.mxu0 %v210
    %227 = vmatpush.xpose.msra.mxu0 %v207
    %228 = vmatpush.xpose.msra.mxu0 %v204
    %229 = vmatpush.xpose.msra.mxu0 %v201
    %230 = vmatpush.xpose.msra.mxu0 %v198
    %231 = vmatpush.xpose.msra.mxu0 %v195
    %232 = vmatpush.xpose.msra.mxu0 %v192
    %233 = vmatpush.xpose.msra.mxu0 %v189
    %234 = vmatpush.xpose.msra.mxu0 %v186
    %235 = vmatpush.xpose.msra.mxu0 %v183
    %236 = vmatpush.xpose.msra.mxu0 %v180
    %237 = vmatpush.xpose.msra.mxu0 %v177
    %238 = vmatpush.xpose.msra.mxu0 %v174
    %239 = vmatpush.xpose.msra.mxu0 %v171
    %240 = vmatmul.f32.gmra.mxu0 %v168
    %v241 = vpop.f32.mrf.mxu0
    %v242 = vadd.f32 0.0, %v241
    %243 = vdwg.mxu0
    %244 = vmatpush.xpose.msra.mxu0 0.0
    %245 = vmatpush.xpose.msra.mxu0 0.0
    %246 = vmatpush.xpose.msra.mxu0 0.0
    %247 = vmatpush.xpose.msra.mxu0 0.0
    %248 = vmatpush.xpose.msra.mxu0 0.0
    %249 = vmatpush.xpose.msra.mxu0 0.0
    %250 = vmatpush.xpose.msra.mxu0 0.0
    %251 = vmatpush.xpose.msra.mxu0 0.0
    %252 = vmatpush.xpose.msra.mxu0 0.0
    %253 = vmatpush.xpose.msra.mxu0 0.0
    %254 = vmatpush.xpose.msra.mxu0 0.0
    %255 = vmatpush.xpose.msra.mxu0 0.0
    %256 = vmatpush.xpose.msra.mxu0 0.0
    %257 = vmatpush.xpose.msra.mxu0 0.0
    %258 = vmatpush.xpose.msra.mxu0 %v222
    %259 = vmatpush.xpose.msra.mxu0 %v219
    %260 = vmatmul.f32.gmra.mxu0 %v168
    %v261 = vpop.f32.mrf.mxu0
    %v262 = vadd.f32 0.0, %v261
    %263 = vdwg.mxu0
    %v264 = vrsqrt.pop %v242
    %v265 = vmul.f32 %v264, %v242
    %v266 = vmul.f32 %v265, %v264
    %v267 = vmul.f32 0.5, %v266
    %v268 = vsub.f32 1.5, %v267
    %v269 = vmul.f32 %v264, %v268
    %v270 = vmul.f32 %v242, %v269
    %vm271 = vcmp.eq.f32.partialorder %v242, inf
    %v272 = vsel %vm271, %v242, %v270
    %vm273 = vcmp.eq.f32.partialorder %v242, 0.0
    %v274 = vand.u32 %v242, 2147483648
    %v275 = vsel %vm273, %v274, %v272
    %v276 = vrsqrt.pop %v262
    %v277 = vmul.f32 %v276, %v262
    %v278 = vmul.f32 %v277, %v276
    %v279 = vmul.f32 0.5, %v278
    %v280 = vsub.f32 1.5, %v279
    %v281 = vmul.f32 %v276, %v280
    %v282 = vmul.f32 %v262, %v281
    %vm283 = vcmp.eq.f32.partialorder %v262, inf
    %v284 = vsel %vm283, %v262, %v282
    %vm285 = vcmp.eq.f32.partialorder %v262, 0.0
    %v286 = vand.u32 %v262, 2147483648
    %v287 = vsel %vm285, %v286, %v284
    %v288 = vperm.slane %v275, 0
    %v289 = vperm.slane %v287, 0
    %v290 = vmul.f32 %v148, %v288
    %v291 = vmul.f32 %v148, %v289
    %v292 = vmax.f32 %v290, 1e-08
    %v293 = vmax.f32 %v291, 1e-08
    %v294 = vrcp.pop %v292
    %v295 = vrcp.pop %v293
    %v296 = vmul.f32 %v111, %v294
    %v297 = vmul.f32 %v131, %v295
    %vm298 = vcmp.gt.f32.partialorder %v34, 0.5
    %v299 = vsel %vm298, 1, 0
    %300 = vset.pattern.permute.xlu0 0
    %301 = vperm.xlu0 %300, %v299
    %v302 = vpop.permute.xlu0 %301
    %vm303 = vcmp.eq.s32.totalorder %v302, 1
    %v304 = vsel %vm303, %v296, 0.0
    %v305 = vsel %vm303, %v297, 0.0
    %v306 = vrot.slane %v304, 4
    %v307 = vmax.f32 %v304, %v306
    %v308 = vrot.slane %v307, 2
    %v309 = vmax.f32 %v307, %v308
    %v310 = vrot.slane %v309, 1
    %v311 = vmax.f32 %v309, %v310
    %vm312 = vcmask 130048
    %v313 = vsel %vm312, %v305, -inf
    %v314 = vrot.slane %v313, 4
    %v315 = vmax.f32 %v313, %v314
    %v316 = vrot.slane %v315, 2
    %v317 = vmax.f32 %v315, %v316
    %v318 = vrot.slane %v317, 1
    %v319 = vmax.f32 %v317, %v318
    %v320 = vmul.f32 %v311, 10.0
    %v321 = vmul.f32 %v319, 10.0
    %v322 = vsel %vm312, %v321, -inf
    %v323 = vmax.f32 %v320, %v322
    %324 = vmax.xlane.f32.xlu0 %v323
    %v325 = vpop.xlane.xlu0 %324
    %v326 = vsub.f32 %v320, %v325
    %v327 = vsub.f32 %v321, %v325
    %v328 = vmul.f32 %v326, 1.442695
    %v329 = vpow.pop %v328
    %v330 = vmul.f32 %v327, 1.442695
    %v331 = vpow.pop %v330
    %v332 = vsel %vm312, %v331, 0.0
    %v333 = vadd.f32 %v329, %v332
    %334 = vadd.xlane.f32.xlu0 %v333
    %v335 = vpop.xlane.xlu0 %334
    %v336 = vrcp.pop %v335
    %v337 = vmul.f32 %v329, %v336
    %v338 = vmul.f32 %v331, %v336
    %v341 = vrot.slane %v338, 7
    %vm342 = vcmask 1040384
    %v343 = vsel %vm342, %v337, %v341
    %v345 = vlaneseq
    %vm346 = vcmp.ge.s32.totalorder %v345, 0
    %vm347 = vcmp.lt.s32.totalorder %v345, 144
    %vm348 = vmand %vm346, %vm347
    %349 = vst.msk [vmem:[#allocation2] sm:$0x3] %vm348, %v343
    // Predicated region
    $region14: #{tpu_custom_call.1} parent=1 // pred_check
      _
    $region15: #{tpu_custom_call.1} parent=1 // pred_check_branch
      %351 = sbr.rel (0) target = $region17
    $region16: #{tpu_custom_call.1} parent=1 // pred_region
      %353 = vsyncadd [#allocation3], 0
      %s355 = sshll.u32 [#allocation2], 4
      %s356 = int_to_ptr.vmem [resolvable:$true] %s355
      %s357 = sshll.u32 %s3, 4
      %s358 = int_to_ptr.hbm [resolvable:$true] %s357
      %360 = dma.vmem_to_hbm [thread:$0]  %s356, 32, %s358, [#allocation3]
    $region17: #{tpu_custom_call.1} parent=1 // pred_fallthru
      _
    // Predicated region
    $region18: #{tpu_custom_call.1} parent=1 // pred_check
      _
    $region19: #{tpu_custom_call.1} parent=1 // pred_check_branch
      %362 = sbr.rel (0) target = $region21
    $region20: #{tpu_custom_call.1} parent=1 // pred_region
      %364 = dma.done [#allocation3], 32
    $region21: #{tpu_custom_call.1} parent=1 // pred_fallthru
      _
    %365 = vsyncpa [#allocation3], 1

</llo_original>
